<compile_context>
chip_gen: v5e
topology: v5e:2x2
jax: 0.10.0
libtpu: 0.0.40
codegen_flags: <defaults>
</compile_context>

<pallas_src>
import jax
import jax.numpy as jnp
from jax import lax
from jax.experimental import pallas as pl
from jax.experimental.pallas import tpu as pltpu


F_PAD = 128  # lane-dense padded feature width (one 128-lane vreg row)


def _round_up(v, m):
    return ((v + m - 1) // m) * m


# ------------------------------ fused kernel ------------------------------

def _armax_kernel(x_ref, dinv_ref, a_ref, w_ref, b_ref, o_ref,
                  h_scr, u_scr, root_scr):
    """Grid = (layer, row_tile), row_tile innermost.

    x_ref    : [N, F_PAD]        bf16  input features (resident, read once)
    dinv_ref : [N, 1]            f32   D^-1/2 (0 for isolated / padded nodes)
    a_ref    : [TM, N]           bf16  adjacency row block (streamed per row tile)
    w_ref    : [F_PAD, 2*F_PAD]  bf16  packed [W_init | W_root] of current layer
    b_ref    : [1, F_PAD]        f32   bias of current layer
    o_ref    : [TM, F_PAD]       f32   output row block (last layer's write wins)
    h_scr    : [N, F_PAD]        bf16  layer-carried activations (updated in place)
    u_scr    : [N, F_PAD]        bf16  dinv * (H @ W_init)  (feeds the propagate)
    root_scr : [N, F_PAD]        f32   H @ W_root           (residual term)
    """
    layer = pl.program_id(0)
    r = pl.program_id(1)
    tm = a_ref.shape[0]
    row0 = pl.multiple_of(r * tm, tm)

    # Seed the layer-carried activation with the input features (once per run).
    @pl.when((layer == 0) & (r == 0))
    def _():
        h_scr[...] = x_ref[...]

    # Per-layer prologue (first row tile): one lane-dense 256-wide bf16 MXU pass
    # computes H @ [W_init | W_root] for all nodes; cache both halves.  H is fully
    # consumed here, so the in-place per-row-tile updates of h_scr below are safe.
    @pl.when(r == 0)
    def _():
        hw = jnp.dot(h_scr[...], w_ref[...],
                     preferred_element_type=jnp.float32)        # [N, 2*F_PAD] f32
        dinv = dinv_ref[...]                                    # [N, 1] f32
        # 128-lane-aligned value slices => vreg selections, not VMEM copies.
        u_scr[...] = (dinv * hw[:, :F_PAD]).astype(jnp.bfloat16)
        root_scr[...] = hw[:, F_PAD:]

    # Propagate for this row block:  dinv_r * (A_r @ (dinv * H W_init)).
    # bf16 MXU inputs, f32 accumulation; all elementwise math stays f32.
    prop = jnp.dot(a_ref[...], u_scr[...],
                   preferred_element_type=jnp.float32)          # [TM, F_PAD] f32
    dinv_rows = dinv_ref[pl.ds(row0, tm), :]                    # [TM, 1] f32
    h_new = jnp.maximum(
        dinv_rows * prop + root_scr[pl.ds(row0, tm), :] + b_ref[...], 0.0)

    h_scr[pl.ds(row0, tm), :] = h_new.astype(jnp.bfloat16)      # next layer's input
    o_ref[...] = h_new


# ------------------------------ wrapper ------------------------------

def _choose_row_tile(n):
    # Small graphs: a single row tile (A resident in VMEM, DMA'd once, minimal
    # zero padding).  Large graphs: stream A in 256-row blocks - big enough to
    # amortize the ~0.35us/grid-step cost, small enough that the double-buffered
    # [TM, N] bf16 block stays a modest slice of VMEM.
    if n <= 512:
        return _round_up(n, 8)
    return 256


def _vmem_limit_bytes(n_pad, tm):
    need = (
        2 * tm * n_pad * 2                  # A row blocks, bf16, double-buffered
        + 2 * tm * F_PAD * 4                # output row blocks, f32, double-buffered
        + n_pad * F_PAD * 2                 # x (bf16, resident)
        + n_pad * 128 * 4                   # dinv ([N,1] f32 pads to 128 lanes)
        + 2 * F_PAD * 2 * F_PAD * 2         # weight block, bf16, double-buffered
        + n_pad * F_PAD * (2 + 2 + 4)       # H(bf16) + U(bf16) + ROOT(f32) scratch
        + n_pad * 2 * F_PAD * 4             # hw temporary in the per-layer prologue
        + (2 << 20)                         # bias blocks / semaphores / slack
    )
    need = int(need * 1.5)                  # headroom for Mosaic temporaries
    try:
        cap = int(pltpu.get_tpu_info().vmem_capacity_bytes)  # 128 MiB v5e/v6e, 64 MiB v7x
    except Exception:
        cap = 128 * 1024 * 1024
    return max(32 * 1024 * 1024, min(need, int(cap * 0.85)))


def armax_forward(params, x, adj):
    """relu(D^-1/2 A D^-1/2 (h W_init) + h W_root + b), stacked len(params) times.

    Assumes a symmetric adjacency (row sums == col sums), matching PyG gcn_norm
    without self loops.  Eval mode: F.dropout(training=False) is the identity.
    """
    n, f_in = x.shape
    nclass = params[-1]["w_init"].shape[1]
    nlayer = len(params)

    tm = _choose_row_tile(n)
    n_pad = _round_up(n, tm)

    # Zero padding is an exact no-op: padded feature columns hit zero weight
    # rows/cols, padded graph rows have zero degree and zero adjacency columns,
    # so they never contribute to real rows.
    x_pad = jnp.zeros((n_pad, F_PAD), jnp.float32).at[:n, :f_in].set(
        x.astype(jnp.float32))
    a_pad = jnp.zeros((n_pad, n_pad), jnp.float32).at[:n, :n].set(
        adj.astype(jnp.float32))

    # gcn_norm (no self loops); a single row-sum reduction suffices for the
    # symmetric adjacency this model is used with.
    # TODO(synk): a directed / non-symmetric adjacency would need separate degrees.
    deg = jnp.sum(a_pad, axis=1, keepdims=True)
    dinv = jnp.where(deg > 0.0, lax.rsqrt(jnp.where(deg > 0.0, deg, 1.0)), 0.0)

    a_bf16 = a_pad.astype(jnp.bfloat16)       # 0/1 entries are exact in bf16
    x_bf16 = x_pad.astype(jnp.bfloat16)

    # Pack [W_init | W_root] per layer into one [F_PAD, 2*F_PAD] bf16 matrix so a
    # single 256-wide MXU pass covers both transforms; stack layers for streaming.
    w_stack = jnp.zeros((nlayer, F_PAD, 2 * F_PAD), jnp.float32)
    b_stack = jnp.zeros((nlayer, 1, F_PAD), jnp.float32)
    for i, lyr in enumerate(params):
        fi, fo = lyr["w_init"].shape
        w_stack = w_stack.at[i, :fi, :fo].set(lyr["w_init"].astype(jnp.float32))
        w_stack = w_stack.at[i, :fi, F_PAD:F_PAD + fo].set(
            lyr["w_root"].astype(jnp.float32))
        b_stack = b_stack.at[i, 0, :fo].set(lyr["bias"].astype(jnp.float32))
    w_stack = w_stack.astype(jnp.bfloat16)

    out_pad = pl.pallas_call(
        _armax_kernel,
        out_shape=jax.ShapeDtypeStruct((n_pad, F_PAD), jnp.float32),
        grid_spec=pltpu.PrefetchScalarGridSpec(
            num_scalar_prefetch=0,
            grid=(nlayer, n_pad // tm),
            in_specs=[
                pl.BlockSpec((n_pad, F_PAD), lambda l, r: (0, 0)),               # x
                pl.BlockSpec((n_pad, 1), lambda l, r: (0, 0)),                   # dinv
                pl.BlockSpec((tm, n_pad), lambda l, r: (r, 0)),                  # A rows
                pl.BlockSpec((None, F_PAD, 2 * F_PAD), lambda l, r: (l, 0, 0)),  # W_l
                pl.BlockSpec((None, 1, F_PAD), lambda l, r: (l, 0, 0)),          # b_l
            ],
            out_specs=pl.BlockSpec((tm, F_PAD), lambda l, r: (r, 0)),
            scratch_shapes=[
                pltpu.VMEM((n_pad, F_PAD), jnp.bfloat16),    # layer-carried H
                pltpu.VMEM((n_pad, F_PAD), jnp.bfloat16),    # dinv * (H @ W_init)
                pltpu.VMEM((n_pad, F_PAD), jnp.float32),     # H @ W_root
            ],
        ),
        compiler_params=pltpu.CompilerParams(
            # Both axes carry VMEM-scratch dependencies (layer chain + per-layer
            # prologue), so neither may be megacore-split.
            # TODO(synk): using v7x's 2nd TensorCore would need per-layer calls
            # with a row-parallel grid (or VMEM_SHARED for the carried H).
            dimension_semantics=("arbitrary", "arbitrary"),
            vmem_limit_bytes=_vmem_limit_bytes(n_pad, tm),
        ),
    )(x_bf16, dinv, a_bf16, w_stack, b_stack)

    # TODO(synk): training-mode dropout not implemented (eval-mode forward only).
    # TODO(synk): for batches of many small graphs, add a leading batch grid axis
    # so one launch amortizes dispatch overhead across graphs.
    return out_pad[:n, :nclass]


# ------------------------------ parameter init ------------------------------

def _glorot(key, fan_in, fan_out):
    limit = jnp.sqrt(6.0 / (fan_in + fan_out))
    return jax.random.uniform(key, (fan_in, fan_out), jnp.float32, -limit, limit)


def init_armax_params(key, nfeat, nhid, nclass, nlayer=3):
    dims = [(nfeat, nhid)] + [(nhid, nhid)] * (nlayer - 2) + [(nhid, nclass)]
    layers = []
    for (fi, fo) in dims:
        key, k1, k2 = jax.random.split(key, 3)
        layers.append(dict(
            w_init=_glorot(k1, fi, fo),
            w_root=_glorot(k2, fi, fo),
            bias=jnp.zeros((fo,), jnp.float32),
        ))
    return layers


# ------------------------------ pure-JAX reference ------------------------------

def _reference_forward(params, x, adj, *, bf16_matmuls):
    """Pure-JAX reference.  bf16_matmuls=True mirrors the kernel's MXU dtype."""
    a = adj.astype(jnp.float32)
    deg = jnp.sum(a, axis=1, keepdims=True)
    dinv = jnp.where(deg > 0.0, lax.rsqrt(jnp.where(deg > 0.0, deg, 1.0)), 0.0)
    cast = (lambda v: v.astype(jnp.bfloat16)) if bf16_matmuls else (lambda v: v)
    h = x.astype(jnp.float32)
    for lyr in params:
        h_init = jnp.dot(cast(h), cast(lyr["w_init"]),
                         preferred_element_type=jnp.float32)
        h_root = jnp.dot(cast(h), cast(lyr["w_root"]),
                         preferred_element_type=jnp.float32)
        u = dinv * h_init
        prop = dinv * jnp.dot(cast(a), cast(u), preferred_element_type=jnp.float32)
        h = jnp.maximum(prop + h_root + lyr["bias"][None, :], 0.0)
    return h


if __name__ == "__main__":
    key = jax.random.PRNGKey(0)
    N, NFEAT, NHID, NCLASS = 32, 16, 32, 8

    kx, ka, kp = jax.random.split(key, 3)
    x = jax.random.normal(kx, (N, NFEAT), jnp.float32)

    # deterministic symmetric 0/1 adjacency, no self loops
    upper = (jax.random.uniform(ka, (N, N)) < 0.2).astype(jnp.float32)
    adj = jnp.triu(upper, k=1)
    adj = adj + adj.T

    params = init_armax_params(kp, NFEAT, NHID, NCLASS, nlayer=3)

    out = jax.jit(armax_forward)(params, x, adj)
    out = jax.block_until_ready(out)
    assert out.shape == (N, NCLASS) and out.dtype == jnp.float32
    assert bool(jnp.all(jnp.isfinite(out)))

    # Tight check vs. a pure-JAX reference using the same bf16-MXU / f32-accumulate
    # numerics as the kernel (validates indexing / layout / fusion exactly).
    ref_bf16 = _reference_forward(params, x, adj, bf16_matmuls=True)
    assert bool(jnp.allclose(out, ref_bf16, rtol=1e-3, atol=1e-3)), \
        float(jnp.max(jnp.abs(out - ref_bf16)))

    # Loose check vs. the full-f32 reference: bounds the bf16-MXU rounding error.
    ref_f32 = _reference_forward(params, x, adj, bf16_matmuls=False)
    assert bool(jnp.allclose(out, ref_f32, rtol=0.25, atol=0.25)), \
        float(jnp.max(jnp.abs(out - ref_f32)))

    print("KERNEL_OK")
</pallas_src>

<mosaic_0001>
module attributes {stable_mosaic.version = 11 : i64} {
  func.func @_armax_kernel(%arg0: i32, %arg1: i32, %arg2: memref<32x128xbf16, #tpu.memory_space<vmem>>, %arg3: memref<32x1xf32, #tpu.memory_space<vmem>>, %arg4: memref<32x32xbf16, #tpu.memory_space<vmem>>, %arg5: memref<1x128x256xbf16, #tpu.memory_space<vmem>>, %arg6: memref<1x1x128xf32, #tpu.memory_space<vmem>>, %arg7: memref<32x128xf32, #tpu.memory_space<vmem>>, %arg8: memref<32x128xbf16, #tpu.memory_space<vmem>>, %arg9: memref<32x128xbf16, #tpu.memory_space<vmem>>, %arg10: memref<32x128xf32, #tpu.memory_space<vmem>>) attributes {dimension_semantics = [#tpu.dimension_semantics<arbitrary>, #tpu.dimension_semantics<arbitrary>], iteration_bounds = array<i64: 3, 1>, scalar_prefetch = 0 : i64, scratch_operands = 3 : i64, tpu.core_type = #tpu.core_type<tc>, window_params = [{pipeline_mode = #tpu.pipeline_mode<synchronous>, transform_indices = @transform_0, window_bounds = array<i64: 32, 128>}, {pipeline_mode = #tpu.pipeline_mode<synchronous>, transform_indices = @transform_1, window_bounds = array<i64: 32, 1>}, {transform_indices = @transform_2, window_bounds = array<i64: 32, 32>}, {transform_indices = @transform_3, window_bounds = array<i64: 1, 128, 256>}, {transform_indices = @transform_4, window_bounds = array<i64: 1, 1, 128>}, {transform_indices = @transform_5, window_bounds = array<i64: 32, 128>}]} {
    %c32_i32 = arith.constant 32 : i32
    %0 = arith.muli %arg1, %c32_i32 : i32
    %1 = tpu.assume_multiple %0, 32 : i32
    %c0_i32 = arith.constant 0 : i32
    %2 = arith.cmpi eq, %arg0, %c0_i32 : i32
    %c0_i32_0 = arith.constant 0 : i32
    %3 = arith.cmpi eq, %arg1, %c0_i32_0 : i32
    %4 = arith.andi %2, %3 : i1
    %5 = arith.extui %4 : i1 to i32
    %c0_i32_1 = arith.constant 0 : i32
    %6 = arith.cmpi ne, %5, %c0_i32_1 : i32
    scf.if %6 {
      %c0_16 = arith.constant 0 : index
      %c0_17 = arith.constant 0 : index
      %30 = vector.load %arg2[%c0_16, %c0_17] : memref<32x128xbf16, #tpu.memory_space<vmem>>, vector<32x128xbf16>
      %c0_18 = arith.constant 0 : index
      %c0_19 = arith.constant 0 : index
      %31 = vector.load %arg8[%c0_18, %c0_19] : memref<32x128xbf16, #tpu.memory_space<vmem>>, vector<32x128xbf16>
      tpu.vector_store %arg8[%c0_18, %c0_19], %30 {strides = array<i32>} : memref<32x128xbf16, #tpu.memory_space<vmem>>, vector<32x128xbf16>,
    } else {
    }
    %c0_i32_2 = arith.constant 0 : i32
    %7 = arith.cmpi eq, %arg1, %c0_i32_2 : i32
    %8 = arith.extui %7 : i1 to i32
    %c0_i32_3 = arith.constant 0 : i32
    %9 = arith.cmpi ne, %8, %c0_i32_3 : i32
    scf.if %9 {
      %c0_16 = arith.constant 0 : index
      %c0_17 = arith.constant 0 : index
      %30 = vector.load %arg8[%c0_16, %c0_17] : memref<32x128xbf16, #tpu.memory_space<vmem>>, vector<32x128xbf16>
      %c0_18 = arith.constant 0 : index
      %c0_19 = arith.constant 0 : index
      %c0_20 = arith.constant 0 : index
      %31 = vector.load %arg5[%c0_18, %c0_19, %c0_20] : memref<1x128x256xbf16, #tpu.memory_space<vmem>>, vector<1x128x256xbf16>
      %32 = vector.shape_cast %31 : vector<1x128x256xbf16> to vector<128x256xbf16>
      %cst_21 = arith.constant dense<0.000000e+00> : vector<32x256xf32>
      %33 = tpu.matmul %30, %32, %cst_21 {dimension_numbers = #tpu.dot_dimension_numbers<[1], [0], [0], [1], [0, 0, 1, 1], [], []>} : vector<32x128xbf16>, vector<128x256xbf16>, vector<32x256xf32> -> vector<32x256xf32>
      %c0_22 = arith.constant 0 : index
      %c0_23 = arith.constant 0 : index
      %34 = vector.load %arg3[%c0_22, %c0_23] : memref<32x1xf32, #tpu.memory_space<vmem>>, vector<32x1xf32>
      %35 = vector.extract_strided_slice %33 {offsets = [0, 0], sizes = [32, 128], strides = [1, 1]} : vector<32x256xf32> to vector<32x128xf32>
      %36 = vector.broadcast %34 : vector<32x1xf32> to vector<32x128xf32>
      %37 = arith.mulf %36, %35 : vector<32x128xf32>
      %38 = arith.truncf %37 : vector<32x128xf32> to vector<32x128xbf16>
      %c0_24 = arith.constant 0 : index
      %c0_25 = arith.constant 0 : index
      %39 = vector.load %arg9[%c0_24, %c0_25] : memref<32x128xbf16, #tpu.memory_space<vmem>>, vector<32x128xbf16>
      tpu.vector_store %arg9[%c0_24, %c0_25], %38 {strides = array<i32>} : memref<32x128xbf16, #tpu.memory_space<vmem>>, vector<32x128xbf16>,
      %40 = vector.extract_strided_slice %33 {offsets = [0, 128], sizes = [32, 128], strides = [1, 1]} : vector<32x256xf32> to vector<32x128xf32>
      %c0_26 = arith.constant 0 : index
      %c0_27 = arith.constant 0 : index
      %41 = vector.load %arg10[%c0_26, %c0_27] : memref<32x128xf32, #tpu.memory_space<vmem>>, vector<32x128xf32>
      tpu.vector_store %arg10[%c0_26, %c0_27], %40 {strides = array<i32>} : memref<32x128xf32, #tpu.memory_space<vmem>>, vector<32x128xf32>,
    } else {
    }
    %c0 = arith.constant 0 : index
    %c0_4 = arith.constant 0 : index
    %10 = vector.load %arg4[%c0, %c0_4] : memref<32x32xbf16, #tpu.memory_space<vmem>>, vector<32x32xbf16>
    %c0_5 = arith.constant 0 : index
    %c0_6 = arith.constant 0 : index
    %11 = vector.load %arg9[%c0_5, %c0_6] : memref<32x128xbf16, #tpu.memory_space<vmem>>, vector<32x128xbf16>
    %cst = arith.constant dense<0.000000e+00> : vector<32x128xf32>
    %12 = tpu.matmul %10, %11, %cst {dimension_numbers = #tpu.dot_dimension_numbers<[1], [0], [0], [1], [0, 0, 1, 1], [], []>} : vector<32x32xbf16>, vector<32x128xbf16>, vector<32x128xf32> -> vector<32x128xf32>
    %13 = arith.index_cast %1 : i32 to index
    %c0_7 = arith.constant 0 : index
    %14 = vector.load %arg3[%13, %c0_7] : memref<32x1xf32, #tpu.memory_space<vmem>>, vector<32x1xf32>
    %15 = vector.broadcast %14 : vector<32x1xf32> to vector<32x128xf32>
    %16 = arith.mulf %15, %12 : vector<32x128xf32>
    %17 = arith.index_cast %1 : i32 to index
    %c0_8 = arith.constant 0 : index
    %18 = vector.load %arg10[%17, %c0_8] : memref<32x128xf32, #tpu.memory_space<vmem>>, vector<32x128xf32>
    %19 = arith.addf %16, %18 : vector<32x128xf32>
    %c0_9 = arith.constant 0 : index
    %c0_10 = arith.constant 0 : index
    %c0_11 = arith.constant 0 : index
    %20 = vector.load %arg6[%c0_9, %c0_10, %c0_11] : memref<1x1x128xf32, #tpu.memory_space<vmem>>, vector<1x1x128xf32>
    %21 = vector.shape_cast %20 : vector<1x1x128xf32> to vector<1x128xf32>
    %22 = vector.broadcast %21 : vector<1x128xf32> to vector<32x128xf32>
    %23 = arith.addf %19, %22 : vector<32x128xf32>
    %cst_12 = arith.constant 0.000000e+00 : f32
    %24 = vector.broadcast %cst_12 : f32 to vector<32x128xf32>
    %25 = arith.maximumf %23, %24 : vector<32x128xf32>
    %26 = arith.truncf %25 : vector<32x128xf32> to vector<32x128xbf16>
    %27 = arith.index_cast %1 : i32 to index
    %c0_13 = arith.constant 0 : index
    %28 = vector.load %arg8[%27, %c0_13] : memref<32x128xbf16, #tpu.memory_space<vmem>>, vector<32x128xbf16>
    tpu.vector_store %arg8[%27, %c0_13], %26 {strides = array<i32>} : memref<32x128xbf16, #tpu.memory_space<vmem>>, vector<32x128xbf16>,
    %c0_14 = arith.constant 0 : index
    %c0_15 = arith.constant 0 : index
    %29 = vector.load %arg7[%c0_14, %c0_15] : memref<32x128xf32, #tpu.memory_space<vmem>>, vector<32x128xf32>
    tpu.vector_store %arg7[%c0_14, %c0_15], %25 {strides = array<i32>} : memref<32x128xf32, #tpu.memory_space<vmem>>, vector<32x128xf32>,
    return
  }
  func.func @transform_0(%arg0: i32, %arg1: i32) -> (i32, i32) {
    %c0_i32 = arith.constant 0 : i32
    %c0_i32_0 = arith.constant 0 : i32
    %c0_i32_1 = arith.constant 0 : i32
    return %c0_i32, %c0_i32_0 : i32, i32
  }
  func.func @transform_1(%arg0: i32, %arg1: i32) -> (i32, i32) {
    %c0_i32 = arith.constant 0 : i32
    %c0_i32_0 = arith.constant 0 : i32
    %c0_i32_1 = arith.constant 0 : i32
    return %c0_i32, %c0_i32_0 : i32, i32
  }
  func.func @transform_2(%arg0: i32, %arg1: i32) -> (i32, i32) {
    %c0_i32 = arith.constant 0 : i32
    %c0_i32_0 = arith.constant 0 : i32
    return %arg1, %c0_i32 : i32, i32
  }
  func.func @transform_3(%arg0: i32, %arg1: i32) -> (i32, i32, i32) {
    %c0_i32 = arith.constant 0 : i32
    %c0_i32_0 = arith.constant 0 : i32
    %c0_i32_1 = arith.constant 0 : i32
    return %arg0, %c0_i32, %c0_i32_0 : i32, i32, i32
  }
  func.func @transform_4(%arg0: i32, %arg1: i32) -> (i32, i32, i32) {
    %c0_i32 = arith.constant 0 : i32
    %c0_i32_0 = arith.constant 0 : i32
    %c0_i32_1 = arith.constant 0 : i32
    return %arg0, %c0_i32, %c0_i32_0 : i32, i32, i32
  }
  func.func @transform_5(%arg0: i32, %arg1: i32) -> (i32, i32) {
    %c0_i32 = arith.constant 0 : i32
    %c0_i32_0 = arith.constant 0 : i32
    return %arg1, %c0_i32 : i32, i32
  }
}

</mosaic_0001>

<llo_original>
// kernel: armax_forward.1
$region0: #{armax_forward.1}
  #allocation0 [shape = 'u32[]', space=smem, size = 0x4, offset = 0x4, fixed_abs, tag = 'smem constant byte address 0x4 - core index']
  #allocation1 [shape = 'u32[72,128]{1,0:T(1,128)}', space=vmem, size = 0x9000, scoped, tag = 'internal scratch']
  #allocation2 [shape = 'bf16[32,128]{1,0:T(8,128)(2,1)}', space=vmem, size = 0x2000, scoped, tag = 'scratch operand']
  #allocation3 [shape = 'bf16[32,128]{1,0:T(8,128)(2,1)}', space=vmem, size = 0x2000, scoped, tag = 'scratch operand']
  #allocation4 [shape = 'f32[32,128]{1,0:T(8,128)}', space=vmem, size = 0x4000, scoped, tag = 'scratch operand']
  %s0 = inlined_call_operand.vmem [shape: bf16[32,128], index: 0, kind: input, shape index: {}]
  %s1 = inlined_call_operand.vmem [shape: f32[32,1], index: 1, kind: input, shape index: {}]
  %s2 = inlined_call_operand.vmem [shape: bf16[32,32], index: 2, kind: input, shape index: {}]
  %s3 = inlined_call_operand.vmem [shape: bf16[3,128,256], index: 3, kind: input, shape index: {}]
  %s4 = inlined_call_operand.vmem [shape: f32[3,1,128], index: 4, kind: input, shape index: {}]
  %s5 = inlined_call_operand.vmem [shape: f32[32,128], index: 5, kind: output, shape index: {}]
  %s6 = sld [smem:[#allocation0]]
  $region61: #{armax_forward.1} parent=0
    _
  %s8 = ssub.s32 1, %s6
  %s9 = scalar_select 0, %s8, %s6
  loop: start=0, step=1, limit=5
  $region2: #{armax_forward.1} parent=0 // loop_pre_header
    _
  $region3: #{armax_forward.1} parent=0 // loop_header
    %s11 = sphi 0, %s15
    %p12 = scmp.ge.s32.totalorder %s11, 5
    %s18 = sphi 0, %s30
    %s19 = sphi 0, %s26
    %s20 = sphi 0, %s18
    %s21 = sphi 0, %s19
    %s22 = sphi 0, %s20
    %s23 = sphi 0, %s21
    %s31 = sphi 0, %s31
    %s33 = sphi 0, %s31
    %s34 = sphi 0, %s33
    %s48 = sphi 0, %s34
    %s52 = sphi 0, %s52
    %s54 = sphi 0, %s52
    %s55 = sphi 0, %s54
    %s69 = sphi 0, %s55
    %s75 = sphi 0, %s77
    %s78 = sphi 0, %s75
    %s79 = sphi 0, %s78
    %s95 = sphi 0, %s79
    %s101 = sphi 0, %s103
    %s104 = sphi 0, %s101
    %s105 = sphi 0, %s104
    %s121 = sphi 0, %s105
    %s127 = sphi 0, %s129
    %s130 = sphi 0, %s127
    %s131 = sphi 0, %s130
    %s147 = sphi 0, %s131
    %s153 = sphi 0, %s155
    %s156 = sphi 0, %s153
    %s157 = sphi 0, %s156
    %s173 = sphi 0, %s157
  $region4: #{armax_forward.1} parent=0 // loop_header_branch
    %14 = sbr.rel (%p12) target = $region8
  $region5: #{armax_forward.1} parent=0 // loop_body
    %s16 = ssub.s32 %s11, 1
    %s17 = ssub.s32 %s11, 2
    %s24 = sadd.s32 1, %s19
    %p25 = scmp.ge.s32.totalorder %s24, 1
    %s26 = scalar_select %p25, 0, %s24
    %s27 = sadd.s32 1, %s18
    %s28 = scalar_select %p25, %s27, %s18
    %p29 = scmp.ge.s32.totalorder %s28, 3
    %s30 = scalar_select %p29, 0, %s28
    %s32 = sadd.s32 %s31, 1
    %p35 = scmp.eq.s32.totalorder %s11, 2
    %p36 = scmp.ne.s32.totalorder %s31, %s33
    %p37 = scmp.eq.s32.totalorder %s11, 0
    %p38 = por %p36, %p37
    %p39 = scmp.ne.s32.totalorder %s31, %s33
    %p40 = scmp.eq.s32.totalorder %s16, 2
    %p41 = por %p39, %p40
    %p42 = scmp.ne.s32.totalorder %s33, %s34
    %p43 = scmp.eq.s32.totalorder %s16, 0
    %p44 = por %p42, %p43
    %p45 = scmp.ne.s32.totalorder %s33, %s34
    %p46 = scmp.eq.s32.totalorder %s17, 2
    %p47 = por %p45, %p46
    %p49 = scmp.ne.s32.totalorder %s34, %s48
    %p50 = scmp.eq.s32.totalorder %s17, 0
    %p51 = por %p49, %p50
    %s53 = sadd.s32 %s52, 1
    %p56 = scmp.eq.s32.totalorder %s11, 2
    %p57 = scmp.ne.s32.totalorder %s52, %s54
    %p58 = scmp.eq.s32.totalorder %s11, 0
    %p59 = por %p57, %p58
    %p60 = scmp.ne.s32.totalorder %s52, %s54
    %p61 = scmp.eq.s32.totalorder %s16, 2
    %p62 = por %p60, %p61
    %p63 = scmp.ne.s32.totalorder %s54, %s55
    %p64 = scmp.eq.s32.totalorder %s16, 0
    %p65 = por %p63, %p64
    %p66 = scmp.ne.s32.totalorder %s54, %s55
    %p67 = scmp.eq.s32.totalorder %s17, 2
    %p68 = por %p66, %p67
    %p70 = scmp.ne.s32.totalorder %s55, %s69
    %p71 = scmp.eq.s32.totalorder %s17, 0
    %p72 = por %p70, %p71
    %s73 = ssub.s32 %s19, %s26
    %p74 = scmp.eq.s32.totalorder %s73, 0
    %s76 = sadd.s32 %s75, 1
    %s77 = scalar_select %p74, %s75, %s76
    %p80 = pneg %p74
    %p81 = scmp.eq.s32.totalorder %s11, 2
    %p82 = por %p80, %p81
    %p83 = scmp.ne.s32.totalorder %s75, %s78
    %p84 = scmp.eq.s32.totalorder %s11, 0
    %p85 = por %p83, %p84
    %p86 = scmp.ne.s32.totalorder %s75, %s78
    %p87 = scmp.eq.s32.totalorder %s16, 2
    %p88 = por %p86, %p87
    %p89 = scmp.ne.s32.totalorder %s78, %s79
    %p90 = scmp.eq.s32.totalorder %s16, 0
    %p91 = por %p89, %p90
    %p92 = scmp.ne.s32.totalorder %s78, %s79
    %p93 = scmp.eq.s32.totalorder %s17, 2
    %p94 = por %p92, %p93
    %p96 = scmp.ne.s32.totalorder %s79, %s95
    %p97 = scmp.eq.s32.totalorder %s17, 0
    %p98 = por %p96, %p97
    %s99 = ssub.s32 %s18, %s30
    %p100 = scmp.eq.s32.totalorder %s99, 0
    %s102 = sadd.s32 %s101, 1
    %s103 = scalar_select %p100, %s101, %s102
    %p106 = pneg %p100
    %p107 = scmp.eq.s32.totalorder %s11, 2
    %p108 = por %p106, %p107
    %p109 = scmp.ne.s32.totalorder %s101, %s104
    %p110 = scmp.eq.s32.totalorder %s11, 0
    %p111 = por %p109, %p110
    %p112 = scmp.ne.s32.totalorder %s101, %s104
    %p113 = scmp.eq.s32.totalorder %s16, 2
    %p114 = por %p112, %p113
    %p115 = scmp.ne.s32.totalorder %s104, %s105
    %p116 = scmp.eq.s32.totalorder %s16, 0
    %p117 = por %p115, %p116
    %p118 = scmp.ne.s32.totalorder %s104, %s105
    %p119 = scmp.eq.s32.totalorder %s17, 2
    %p120 = por %p118, %p119
    %p122 = scmp.ne.s32.totalorder %s105, %s121
    %p123 = scmp.eq.s32.totalorder %s17, 0
    %p124 = por %p122, %p123
    %s125 = ssub.s32 %s18, %s30
    %p126 = scmp.eq.s32.totalorder %s125, 0
    %s128 = sadd.s32 %s127, 1
    %s129 = scalar_select %p126, %s127, %s128
    %p132 = pneg %p126
    %p133 = scmp.eq.s32.totalorder %s11, 2
    %p134 = por %p132, %p133
    %p135 = scmp.ne.s32.totalorder %s127, %s130
    %p136 = scmp.eq.s32.totalorder %s11, 0
    %p137 = por %p135, %p136
    %p138 = scmp.ne.s32.totalorder %s127, %s130
    %p139 = scmp.eq.s32.totalorder %s16, 2
    %p140 = por %p138, %p139
    %p141 = scmp.ne.s32.totalorder %s130, %s131
    %p142 = scmp.eq.s32.totalorder %s16, 0
    %p143 = por %p141, %p142
    %p144 = scmp.ne.s32.totalorder %s130, %s131
    %p145 = scmp.eq.s32.totalorder %s17, 2
    %p146 = por %p144, %p145
    %p148 = scmp.ne.s32.totalorder %s131, %s147
    %p149 = scmp.eq.s32.totalorder %s17, 0
    %p150 = por %p148, %p149
    %s151 = ssub.s32 %s19, %s26
    %p152 = scmp.eq.s32.totalorder %s151, 0
    %s154 = sadd.s32 %s153, 1
    %s155 = scalar_select %p152, %s153, %s154
    %p158 = pneg %p152
    %p159 = scmp.eq.s32.totalorder %s11, 2
    %p160 = por %p158, %p159
    %p161 = scmp.ne.s32.totalorder %s153, %s156
    %p162 = scmp.eq.s32.totalorder %s11, 0
    %p163 = por %p161, %p162
    %p164 = scmp.ne.s32.totalorder %s153, %s156
    %p165 = scmp.eq.s32.totalorder %s16, 2
    %p166 = por %p164, %p165
    %p167 = scmp.ne.s32.totalorder %s156, %s157
    %p168 = scmp.eq.s32.totalorder %s16, 0
    %p169 = por %p167, %p168
    %p170 = scmp.ne.s32.totalorder %s156, %s157
    %p171 = scmp.eq.s32.totalorder %s17, 2
    %p172 = por %p170, %p171
    %p174 = scmp.ne.s32.totalorder %s157, %s173
    %p175 = scmp.eq.s32.totalorder %s17, 0
    %p176 = por %p174, %p175
    %p177 = scmp.le.s32.totalorder 1, %s11
    %p178 = scmp.lt.s32.totalorder %s11, 4
    %p179 = pnand %p177, %p178
    %p180 = pneg %p179
    // Predicated region
    $region9: #{armax_forward.1} parent=5 // pred_check
      _
    $region10: #{armax_forward.1} parent=5 // pred_check_branch
      %182 = sbr.rel (%p179) target = $region12
    $region11: #{armax_forward.1} parent=5 // pred_region
      %s183 = ssub.s32 %s11, 1
      // Predicated region
      $region13: #{armax_forward.1} parent=11 // pred_check
        %p184 = pneg %p44
      $region14: #{armax_forward.1} parent=11 // pred_check_branch
        %186 = sbr.rel (%p184) target = $region16
      $region15: #{armax_forward.1} parent=11 // pred_region
        _
      $region16: #{armax_forward.1} parent=11 // pred_fallthru
        _
      // Predicated region
      $region17: #{armax_forward.1} parent=11 // pred_check
        %p187 = pneg %p65
      $region18: #{armax_forward.1} parent=11 // pred_check_branch
        %189 = sbr.rel (%p187) target = $region20
      $region19: #{armax_forward.1} parent=11 // pred_region
        _
      $region20: #{armax_forward.1} parent=11 // pred_fallthru
        _
      // Predicated region
      $region21: #{armax_forward.1} parent=11 // pred_check
        %p190 = pneg %p91
      $region22: #{armax_forward.1} parent=11 // pred_check_branch
        %192 = sbr.rel (%p190) target = $region24
      $region23: #{armax_forward.1} parent=11 // pred_region
        %s193 = smul.u32 4, %s21
        %p194 = scmp.lt.s32.totalorder %s193, 3
        %s195 = scalar_select %p194, %s193, 3
        %s196 = smul.addr %s195, 4
        %s197 = scalar_lea.vmem %s2, %s196
        %s198 = smul.u32 4, %s21
      $region24: #{armax_forward.1} parent=11 // pred_fallthru
        _
    $region12: #{armax_forward.1} parent=5 // pred_fallthru
      _
    %p199 = scmp.lt.s32.totalorder %s11, 3
    // Predicated region
    $region25: #{armax_forward.1} parent=5 // pred_check
      %p200 = pneg %p199
    $region26: #{armax_forward.1} parent=5 // pred_check_branch
      %202 = sbr.rel (%p200) target = $region28
    $region27: #{armax_forward.1} parent=5 // pred_region
      // Predicated region
      $region29: #{armax_forward.1} parent=27 // pred_check
        %p203 = pneg %p111
      $region30: #{armax_forward.1} parent=27 // pred_check_branch
        %205 = sbr.rel (%p203) target = $region32
      $region31: #{armax_forward.1} parent=27 // pred_region
        %p206 = scmp.lt.s32.totalorder %s18, 2
        %s207 = scalar_select %p206, %s18, 2
        %s208 = smul.addr %s207, 32
        %s209 = smul.addr %s208, 4
        %s210 = scalar_lea.vmem %s3, %s209
      $region32: #{armax_forward.1} parent=27 // pred_fallthru
        _
      // Predicated region
      $region33: #{armax_forward.1} parent=27 // pred_check
        %p211 = pneg %p137
      $region34: #{armax_forward.1} parent=27 // pred_check_branch
        %213 = sbr.rel (%p211) target = $region36
      $region35: #{armax_forward.1} parent=27 // pred_region
        %p214 = scmp.lt.s32.totalorder %s18, 2
        %s215 = scalar_select %p214, %s18, 2
        %s216 = scalar_lea.vmem %s4, %s215
      $region36: #{armax_forward.1} parent=27 // pred_fallthru
        _
    $region28: #{armax_forward.1} parent=5 // pred_fallthru
      _
    %p217 = scmp.le.s32.totalorder 1, %s11
    %p218 = scmp.lt.s32.totalorder %s11, 4
    %p219 = pnand %p217, %p218
    %p220 = pneg %p219
    // Predicated region
    $region37: #{armax_forward.1} parent=5 // pred_check
      _
    $region38: #{armax_forward.1} parent=5 // pred_check_branch
      %222 = sbr.rel (%p219) target = $region40
    $region39: #{armax_forward.1} parent=5 // pred_region
      %s223 = ssub.s32 %s11, 1
      %p224 = pneg %p44
      %p225 = pneg %p41
      %p226 = pneg %p65
      %p227 = pneg %p62
      %s228 = smul.u32 4, %s21
      %p229 = scmp.lt.s32.totalorder %s228, 3
      %s230 = scalar_select %p229, %s228, 3
      %s231 = smul.addr %s230, 4
      %s232 = scalar_lea.vmem %s2, %s231
      %p233 = pneg %p91
      %p234 = pneg %p88
      %p235 = scmp.lt.s32.totalorder %s20, 2
      %s236 = scalar_select %p235, %s20, 2
      %s237 = smul.addr %s236, 32
      %s238 = smul.addr %s237, 4
      %s239 = scalar_lea.vmem %s3, %s238
      %p240 = pneg %p117
      %p241 = pneg %p114
      %p242 = scmp.lt.s32.totalorder %s20, 2
      %s243 = scalar_select %p242, %s20, 2
      %s244 = scalar_lea.vmem %s4, %s243
      %p245 = pneg %p143
      %p246 = pneg %p140
      %p247 = pneg %p169
      %p248 = pneg %p166
      %s249 = smul.u32 4, %s21
      %p250 = scmp.lt.s32.totalorder %s249, 3
      %s251 = scalar_select %p250, %s249, 3
      %s252 = smul.addr %s251, 8
      %s253 = scalar_lea.vmem %s5, %s252
      %s254 = smul.u32 4, %s21
      %p255 = scmp.lt.s32.totalorder %s254, 3
      %s256 = scalar_select %p255, %s254, 3
      %s257 = smul.addr %s256, 4
      %s258 = scalar_lea.vmem %s2, %s257
      %s259 = smul.u32 4, %s21
      %p260 = scmp.lt.s32.totalorder %s20, 2
      %s261 = scalar_select %p260, %s20, 2
      %s262 = smul.addr %s261, 32
      %s263 = smul.addr %s262, 4
      %s264 = scalar_lea.vmem %s3, %s263
      %p265 = scmp.lt.s32.totalorder %s20, 2
      %s266 = scalar_select %p265, %s20, 2
      %s267 = scalar_lea.vmem %s4, %s266
      %s268 = smul.u32 4, %s21
      %p269 = scmp.lt.s32.totalorder %s268, 3
      %s270 = scalar_select %p269, %s268, 3
      %s271 = smul.addr %s270, 8
      %s272 = scalar_lea.vmem %s5, %s271
      %s273 = smul.u32 4, %s21
      %s275 = smul.u32 %s21, 32
      %p276 = scmp.eq.s32.totalorder %s20, 0
      %p277 = scmp.eq.s32.totalorder %s21, 0
      %p278 = pnand %p276, %p277
      %p279 = pneg %p278
      // Predicated region
      $region41: #{armax_forward.1} parent=39 // pred_check
        _
      $region42: #{armax_forward.1} parent=39 // pred_check_branch
        %281 = sbr.rel (%p278) target = $region44
      $region43: #{armax_forward.1} parent=39 // pred_region
        %v282 = vld [vmem:[%s0] sm:$0xf]
        %v283 = vld [vmem:[%s0 + $0x4] sm:$0xf]
        %v284 = vld [vmem:[%s0 + $0x8] sm:$0xf]
        %v285 = vld [vmem:[%s0 + $0xc] sm:$0xf]
        %286 = vst [vmem:[#allocation2] sm:$0xf] %v282
        %287 = vst [vmem:[#allocation2 + $0x4] sm:$0xf] %v283
        %288 = vst [vmem:[#allocation2 + $0x8] sm:$0xf] %v284
        %289 = vst [vmem:[#allocation2 + $0xc] sm:$0xf] %v285
      $region44: #{armax_forward.1} parent=39 // pred_fallthru
        _
      // Predicated region
      $region45: #{armax_forward.1} parent=39 // pred_check
        %p290 = pneg %p277
      $region46: #{armax_forward.1} parent=39 // pred_check_branch
        %292 = sbr.rel (%p290) target = $region48
      $region47: #{armax_forward.1} parent=39 // pred_region
        %v293 = vld [vmem:[#allocation2] sm:$0xf]
        %v294 = vld [vmem:[#allocation2 + $0x4] sm:$0xf]
        %v295 = vld [vmem:[#allocation2 + $0x8] sm:$0xf]
        %v296 = vld [vmem:[#allocation2 + $0xc] sm:$0xf]
        %v297 = vld [vmem:[%s264] sm:$0xff]
        %v298 = vld [vmem:[%s264 + $0x8] sm:$0xff]
        %v299 = vld [vmem:[%s264 + $0x10] sm:$0xff]
        %v300 = vld [vmem:[%s264 + $0x18] sm:$0xff]
        %v301 = vld [vmem:[%s264 + $0x20] sm:$0xff]
        %v302 = vld [vmem:[%s264 + $0x28] sm:$0xff]
        %v303 = vld [vmem:[%s264 + $0x30] sm:$0xff]
        %v304 = vld [vmem:[%s264 + $0x38] sm:$0xff]
        %v305 = vld [vmem:[%s264 + $0x40] sm:$0xff]
        %v306 = vld [vmem:[%s264 + $0x48] sm:$0xff]
        %v307 = vld [vmem:[%s264 + $0x50] sm:$0xff]
        %v308 = vld [vmem:[%s264 + $0x58] sm:$0xff]
        %v309 = vld [vmem:[%s264 + $0x60] sm:$0xff]
        %v310 = vld [vmem:[%s264 + $0x68] sm:$0xff]
        %v311 = vld [vmem:[%s264 + $0x70] sm:$0xff]
        %v312 = vld [vmem:[%s264 + $0x78] sm:$0xff]
        %v317 = vunpack.c.l.b16 %v293
        %v318 = vunpack.c.l.b16 %v294
        %v319 = vunpack.c.l.b16 %v295
        %v320 = vunpack.c.l.b16 %v296
        %v321 = vpack.c.b16 %v318, %v317
        %v322 = vpack.c.b16 %v320, %v319
        %v341 = vunpack.c.l.b16 %v297
        %v342 = vunpack.c.h.b16 %v297
        %v343 = vunpack.c.l.b16 %v298
        %v344 = vunpack.c.h.b16 %v298
        %v345 = vunpack.c.l.b16 %v299
        %v346 = vunpack.c.h.b16 %v299
        %v347 = vunpack.c.l.b16 %v300
        %v348 = vunpack.c.h.b16 %v300
        %v349 = vunpack.c.l.b16 %v301
        %v350 = vunpack.c.h.b16 %v301
        %v351 = vunpack.c.l.b16 %v302
        %v352 = vunpack.c.h.b16 %v302
        %v353 = vunpack.c.l.b16 %v303
        %v354 = vunpack.c.h.b16 %v303
        %v355 = vunpack.c.l.b16 %v304
        %v356 = vunpack.c.h.b16 %v304
        %v357 = vunpack.c.l.b16 %v305
        %v358 = vunpack.c.h.b16 %v305
        %v359 = vunpack.c.l.b16 %v306
        %v360 = vunpack.c.h.b16 %v306
        %v361 = vunpack.c.l.b16 %v307
        %v362 = vunpack.c.h.b16 %v307
        %v363 = vunpack.c.l.b16 %v308
        %v364 = vunpack.c.h.b16 %v308
        %v365 = vunpack.c.l.b16 %v309
        %v366 = vunpack.c.h.b16 %v309
        %v367 = vunpack.c.l.b16 %v310
        %v368 = vunpack.c.h.b16 %v310
        %v369 = vunpack.c.l.b16 %v311
        %v370 = vunpack.c.h.b16 %v311
        %v371 = vunpack.c.l.b16 %v312
        %v372 = vunpack.c.h.b16 %v312
        %v373 = vpack.c.b16 %v343, %v341
        %v374 = vpack.c.b16 %v344, %v342
        %v375 = vpack.c.b16 %v347, %v345
        %v376 = vpack.c.b16 %v348, %v346
        %v377 = vpack.c.b16 %v351, %v349
        %v378 = vpack.c.b16 %v352, %v350
        %v379 = vpack.c.b16 %v355, %v353
        %v380 = vpack.c.b16 %v356, %v354
        %v381 = vpack.c.b16 %v359, %v357
        %v382 = vpack.c.b16 %v360, %v358
        %v383 = vpack.c.b16 %v363, %v361
        %v384 = vpack.c.b16 %v364, %v362
        %v385 = vpack.c.b16 %v367, %v365
        %v386 = vpack.c.b16 %v368, %v366
        %v387 = vpack.c.b16 %v371, %v369
        %v388 = vpack.c.b16 %v372, %v370
        %405 = vmatpush.bf16.msra.mxu0 %v387
        %406 = vmatpush.bf16.msra.mxu0 %v385
        %407 = vmatpush.bf16.msra.mxu0 %v383
        %408 = vmatpush.bf16.msra.mxu0 %v381
        %409 = vmatpush.bf16.msra.mxu0 %v379
        %410 = vmatpush.bf16.msra.mxu0 %v377
        %411 = vmatpush.bf16.msra.mxu0 %v375
        %412 = vmatpush.bf16.msra.mxu0 %v373
        %413 = vmatmul.bf16.gmra.mxu0 %v321
        %v414 = vpop.f32.mrf.mxu0
        %v415 = vadd.f32 0.0, %v414
        %v416 = vpop.f32.mrf.mxu0
        %v417 = vadd.f32 0.0, %v416
        %418 = vmatmul.bf16.gmra.mxu0 %v322
        %v419 = vpop.f32.mrf.mxu0
        %v420 = vadd.f32 0.0, %v419
        %v421 = vpop.f32.mrf.mxu0
        %v422 = vadd.f32 0.0, %v421
        %423 = vdwg.mxu0
        %424 = vmatpush.bf16.msra.mxu0 %v388
        %425 = vmatpush.bf16.msra.mxu0 %v386
        %426 = vmatpush.bf16.msra.mxu0 %v384
        %427 = vmatpush.bf16.msra.mxu0 %v382
        %428 = vmatpush.bf16.msra.mxu0 %v380
        %429 = vmatpush.bf16.msra.mxu0 %v378
        %430 = vmatpush.bf16.msra.mxu0 %v376
        %431 = vmatpush.bf16.msra.mxu0 %v374
        %432 = vmatmul.bf16.gmra.mxu0 %v321
        %v433 = vpop.f32.mrf.mxu0
        %v434 = vadd.f32 0.0, %v433
        %v435 = vpop.f32.mrf.mxu0
        %v436 = vadd.f32 0.0, %v435
        %437 = vmatmul.bf16.gmra.mxu0 %v322
        %v438 = vpop.f32.mrf.mxu0
        %v439 = vadd.f32 0.0, %v438
        %v440 = vpop.f32.mrf.mxu0
        %v441 = vadd.f32 0.0, %v440
        %442 = vdwg.mxu0
        %v443 = vld [vmem:[%s1] sm:$0xff]
        %v444 = vld [vmem:[%s1 + $0x8] sm:$0xff]
        %v445 = vld [vmem:[%s1 + $0x10] sm:$0xff]
        %v446 = vld [vmem:[%s1 + $0x18] sm:$0xff]
        %448 = vset.pattern.permute.xlu0 0
        %449 = vperm.xlu0 %448, %v443
        %v450 = vpop.permute.xlu0 %449
        %453 = vset.pattern.permute.xlu0 0
        %454 = vperm.xlu0 %453, %v444
        %v455 = vpop.permute.xlu0 %454
        %458 = vset.pattern.permute.xlu0 0
        %459 = vperm.xlu0 %458, %v445
        %v460 = vpop.permute.xlu0 %459
        %463 = vset.pattern.permute.xlu0 0
        %464 = vperm.xlu0 %463, %v446
        %v465 = vpop.permute.xlu0 %464
        %v467 = vmul.f32 %v450, %v415
        %v468 = vmul.f32 %v455, %v417
        %v469 = vmul.f32 %v460, %v420
        %v470 = vmul.f32 %v465, %v422
        %v471 = vpack.c.bf16 %v467, %v467
        %v472 = vpack.c.bf16 %v468, %v468
        %v473 = vpack.c.bf16 %v469, %v469
        %v474 = vpack.c.bf16 %v470, %v470
        %475 = vst [vmem:[#allocation3] sm:$0xf] %v471
        %476 = vst [vmem:[#allocation3 + $0x4] sm:$0xf] %v472
        %477 = vst [vmem:[#allocation3 + $0x8] sm:$0xf] %v473
        %478 = vst [vmem:[#allocation3 + $0xc] sm:$0xf] %v474
        %479 = vst [vmem:[#allocation4] sm:$0xff] %v434
        %480 = vst [vmem:[#allocation4 + $0x8] sm:$0xff] %v436
        %481 = vst [vmem:[#allocation4 + $0x10] sm:$0xff] %v439
        %482 = vst [vmem:[#allocation4 + $0x18] sm:$0xff] %v441
      $region48: #{armax_forward.1} parent=39 // pred_fallthru
        _
      %v483 = vld [vmem:[%s258] sm:$0xf]
      %v484 = vld [vmem:[%s258 + $0x4] sm:$0xf]
      %v485 = vld [vmem:[%s258 + $0x8] sm:$0xf]
      %v486 = vld [vmem:[%s258 + $0xc] sm:$0xf]
      %v487 = vld [vmem:[#allocation3] sm:$0xf]
      %v488 = vld [vmem:[#allocation3 + $0x4] sm:$0xf]
      %v489 = vld [vmem:[#allocation3 + $0x8] sm:$0xf]
      %v490 = vld [vmem:[#allocation3 + $0xc] sm:$0xf]
      %v495 = vunpack.c.l.b16 %v483
      %v496 = vunpack.c.l.b16 %v484
      %v497 = vunpack.c.l.b16 %v485
      %v498 = vunpack.c.l.b16 %v486
      %v499 = vpack.c.b16 %v496, %v495
      %v500 = vpack.c.b16 %v498, %v497
      %v505 = vunpack.c.l.b16 %v487
      %v506 = vunpack.c.l.b16 %v488
      %v507 = vunpack.c.l.b16 %v489
      %v508 = vunpack.c.l.b16 %v490
      %v509 = vpack.c.b16 %v506, %v505
      %v510 = vpack.c.b16 %v508, %v507
      %vm513 = vcmask 261120
      %v515 = vsel %vm513, %v499, 0
      %v518 = vsel %vm513, %v500, 0
      %520 = vmatpush.bf16.msra.mxu0 0
      %521 = vmatpush.bf16.msra.mxu0 0
      %522 = vmatpush.bf16.msra.mxu0 0
      %523 = vmatpush.bf16.msra.mxu0 0
      %524 = vmatpush.bf16.msra.mxu0 0
      %525 = vmatpush.bf16.msra.mxu0 0
      %526 = vmatpush.bf16.msra.mxu0 %v510
      %527 = vmatpush.bf16.msra.mxu0 %v509
      %528 = vmatmul.bf16.gmra.mxu0 %v515
      %v529 = vpop.f32.mrf.mxu0
      %v530 = vadd.f32 0.0, %v529
      %v531 = vpop.f32.mrf.mxu0
      %v532 = vadd.f32 0.0, %v531
      %533 = vmatmul.bf16.gmra.mxu0 %v518
      %v534 = vpop.f32.mrf.mxu0
      %v535 = vadd.f32 0.0, %v534
      %v536 = vpop.f32.mrf.mxu0
      %v537 = vadd.f32 0.0, %v536
      %538 = vdwg.mxu0
      %s539 = scalar_lea.vmem %s1, %s275
      %v540 = vld [vmem:[%s539] sm:$0xff]
      %v541 = vld [vmem:[%s539 + $0x8] sm:$0xff]
      %v542 = vld [vmem:[%s539 + $0x10] sm:$0xff]
      %v543 = vld [vmem:[%s539 + $0x18] sm:$0xff]
      %545 = vset.pattern.permute.xlu0 0
      %546 = vperm.xlu0 %545, %v540
      %v547 = vpop.permute.xlu0 %546
      %550 = vset.pattern.permute.xlu0 0
      %551 = vperm.xlu0 %550, %v541
      %v552 = vpop.permute.xlu0 %551
      %555 = vset.pattern.permute.xlu0 0
      %556 = vperm.xlu0 %555, %v542
      %v557 = vpop.permute.xlu0 %556
      %560 = vset.pattern.permute.xlu0 0
      %561 = vperm.xlu0 %560, %v543
      %v562 = vpop.permute.xlu0 %561
      %v564 = vmul.f32 %v547, %v530
      %v565 = vmul.f32 %v552, %v532
      %v566 = vmul.f32 %v557, %v535
      %v567 = vmul.f32 %v562, %v537
      %s568 = scalar_lea.vmem [#allocation4], %s275
      %v569 = vld [vmem:[%s568] sm:$0xff]
      %v570 = vld [vmem:[%s568 + $0x8] sm:$0xff]
      %v571 = vld [vmem:[%s568 + $0x10] sm:$0xff]
      %v572 = vld [vmem:[%s568 + $0x18] sm:$0xff]
      %v573 = vadd.f32 %v564, %v569
      %v574 = vadd.f32 %v565, %v570
      %v575 = vadd.f32 %v566, %v571
      %v576 = vadd.f32 %v567, %v572
      %v577 = vld [vmem:[%s267] sm:$0x1]
      %v579 = vperm.slane %v577, 0
      %v581 = vadd.f32 %v573, %v579
      %v582 = vadd.f32 %v574, %v579
      %v583 = vadd.f32 %v575, %v579
      %v584 = vadd.f32 %v576, %v579
      %v585 = vmax.f32 %v581, 0.0
      %v586 = vmax.f32 %v582, 0.0
      %v587 = vmax.f32 %v583, 0.0
      %v588 = vmax.f32 %v584, 0.0
      %v589 = vpack.c.bf16 %v585, %v585
      %v590 = vpack.c.bf16 %v586, %v586
      %v591 = vpack.c.bf16 %v587, %v587
      %v592 = vpack.c.bf16 %v588, %v588
      %s593 = sshra.s32 %s275, 3
      %s594 = sand.u32 %s275, 7
      %s595 = smul.addr %s593, 4
      %s596 = scalar_lea.vmem [#allocation2], %s595
      %597 = vst [vmem:[%s596] sm:$0xf] %v589
      %598 = vst [vmem:[%s596 + $0x4] sm:$0xf] %v590
      %599 = vst [vmem:[%s596 + $0x8] sm:$0xf] %v591
      %600 = vst [vmem:[%s596 + $0xc] sm:$0xf] %v592
      %601 = vst [vmem:[%s272] sm:$0xff] %v585
      %602 = vst [vmem:[%s272 + $0x8] sm:$0xff] %v586
      %603 = vst [vmem:[%s272 + $0x10] sm:$0xff] %v587
      %604 = vst [vmem:[%s272 + $0x18] sm:$0xff] %v588
      %s605 = smul.u32 4, %s21
      %p606 = scmp.lt.s32.totalorder %s605, 3
      %s607 = scalar_select %p606, %s605, 3
      %s608 = smul.addr %s607, 8
      %s609 = scalar_lea.vmem %s5, %s608
      // Predicated region
      $region49: #{armax_forward.1} parent=39 // pred_check
        %p610 = pneg %p166
      $region50: #{armax_forward.1} parent=39 // pred_check_branch
        %612 = sbr.rel (%p610) target = $region52
      $region51: #{armax_forward.1} parent=39 // pred_region
        %s613 = smul.u32 4, %s21
      $region52: #{armax_forward.1} parent=39 // pred_fallthru
        _
      // Predicated region
      $region53: #{armax_forward.1} parent=39 // pred_check
        %p614 = pneg %p166
      $region54: #{armax_forward.1} parent=39 // pred_check_branch
        %616 = sbr.rel (%p614) target = $region56
      $region55: #{armax_forward.1} parent=39 // pred_region
        %s617 = smul.u32 4, %s21
        %p618 = scmp.lt.s32.totalorder %s617, 3
        %s619 = scalar_select %p618, %s617, 3
        %s620 = smul.addr %s619, 8
        %s621 = scalar_lea.vmem %s5, %s620
      $region56: #{armax_forward.1} parent=39 // pred_fallthru
        _
    $region40: #{armax_forward.1} parent=5 // pred_fallthru
      _
    %p622 = scmp.le.s32.totalorder 2, %s11
    // Predicated region
    $region57: #{armax_forward.1} parent=5 // pred_check
      %p623 = pneg %p622
    $region58: #{armax_forward.1} parent=5 // pred_check_branch
      %625 = sbr.rel (%p623) target = $region60
    $region59: #{armax_forward.1} parent=5 // pred_region
      %s626 = ssub.s32 %s11, 2
    $region60: #{armax_forward.1} parent=5 // pred_fallthru
      _
  $region6: #{armax_forward.1} parent=0 // loop_footer
    %s15 = sadd.s32 1, %s11
  $region7: #{armax_forward.1} parent=0 // loop_footer_branch
    %10 = sbr.rel target = $region3
  $region8: #{armax_forward.1} parent=0 // loop_exit
    _

</llo_original>
